<compile_context>
chip_gen: v6e
topology: v6e:2x2x1
jax: 0.10.0
libtpu: 0.0.40
codegen_flags: <defaults>
</compile_context>

<pallas_src>
import math
import numpy as np
import jax
import jax.numpy as jnp
from jax.experimental import pallas as pl
from jax.experimental.pallas import tpu as pltpu


def _patch_kernel(x_ref, w_ref, b_ref, o_ref):
    # x_ref: (tr, r*P) packed patch rows
    # w_ref: (r*P, r*d) block-diagonal fused DFT+embedding weight (resident)
    # b_ref: (1, r*d)  bias tiled r times (f32)
    y = jnp.dot(x_ref[...], w_ref[...], preferred_element_type=jnp.float32)
    o_ref[...] = (y + b_ref[...]).astype(o_ref.dtype)


def _round_up(n, m):
    return ((n + m - 1) // m) * m


def _lane_pad(n):
    return _round_up(n, 128)


def _pick_r(P, d, M, *, max_r=64, max_weight_bytes=8 << 20):
    """Number of patches packed per kernel row.

    Preference order:
      1. r such that r*P and r*d are both multiples of 128 (lane-dense input
         and output) AND r divides M (no pad copy).
      2. r giving output lane-density only, dividing M.
      3. Same two options but requiring an input pad copy (M % r != 0).
      4. r = 1 fallback (lane-masked stores; perf cliff but correct).
    The kron weight (r*P, r*d) is capped so it stays a small VMEM resident.
    """
    def fits(r):
        return 1 <= r <= max_r and (r * P) * (r * d) * 4 <= max_weight_bytes

    r_out = 128 // math.gcd(d, 128)            # output lane density
    r_in = 128 // math.gcd(P, 128)             # input lane density
    r_full = r_out * r_in // math.gcd(r_out, r_in)
    for r in (r_full, r_out):                  # no-padding candidates first
        if fits(r) and M % r == 0:
            return r
    for r in (r_full, r_out):                  # padding needed (one input copy)
        if fits(r):
            return r
    return 1


def _vmem_budget():
    """Per-step VMEM byte budget + scoped limit, sized per TPU generation."""
    try:
        vmem_cap = int(pltpu.get_tpu_info().vmem_capacity_bytes)
    except Exception:                          # interpret mode / old jax
        vmem_cap = 64 << 20                    # conservative (v7x per-TC)
    budget = min(max(vmem_cap // 2 - (4 << 20), 16 << 20), 44 << 20)
    vmem_limit = int(min(vmem_cap, budget + (16 << 20)))
    return int(budget), vmem_limit


def patch_forward(x, weight, bias, patch_size, *, out_dtype=jnp.float32,
                  transpose_output=True):
    """x: (B, N, C=1, L); weight: (d, (P/2+1)*2); bias: (d,).

    Returns (B, N, d, L/P) when transpose_output=True (PyTorch semantics).
    transpose_output=False returns (B, N, L/P, d) and skips an extra HBM
    round-trip if the consumer can take patch-major layout.
    out_dtype=jnp.bfloat16 halves output HBM traffic when tolerated.
    """
    B, N, C, L = x.shape
    assert C == 1, "spectral path implies C == 1 (the .squeeze(2) in the reference)"
    P = patch_size
    assert L % P == 0
    n_patch = L // P
    F = P // 2 + 1
    d = weight.shape[0]
    M = B * N * n_patch

    # Real-DFT matrix (P, 2F): columns = [cos(2*pi*n*k/P) | -sin(2*pi*n*k/P)],
    # so patches @ dft == cat([rfft(patches).real, rfft(patches).imag], -1).
    # Fuse with the linear layer at trace time (both are constants).
    n = np.arange(P)[:, None]
    k = np.arange(F)[None, :]
    ang = 2.0 * np.pi * n * k / P
    dft = np.concatenate([np.cos(ang), -np.sin(ang)], axis=1)                # (P, 2F)
    combined = jnp.asarray(dft, jnp.float32) @ weight.astype(jnp.float32).T  # (P, d)

    # Keep the input in its native dtype (MXU is bf16-native; f32 works too).
    patches = x.reshape(M, P)                                                # view
    if patches.dtype == jnp.float32 or patches.dtype == jnp.bfloat16:
        in_dtype = patches.dtype
    else:
        patches = patches.astype(jnp.float32)
        in_dtype = jnp.float32

    # Patch packing factor (lane-dense input/output, divides M when possible).
    r = _pick_r(P, d, M)
    w_dtype = jnp.bfloat16 if in_dtype == jnp.bfloat16 else jnp.float32
    w_big = jnp.kron(jnp.eye(r, dtype=jnp.float32), combined).astype(w_dtype)  # (r*P, r*d)
    b_big = jnp.tile(bias.astype(jnp.float32), r).reshape(1, r * d)            # (1, r*d)

    M_pad = _round_up(M, r)
    if M_pad != M:
        # Rare fallback: one extra read+write of the input to pad the tail.
        patches = jnp.concatenate(
            [patches, jnp.zeros((M_pad - M, P), patches.dtype)], axis=0)
    Mr = M_pad // r
    xp = patches.reshape(Mr, r * P)                                          # free reshape

    # Row-tile size from the VMEM budget: double-buffered input + output
    # tiles plus (conservatively double-buffered) resident weight.
    budget, vmem_limit = _vmem_budget()
    in_bytes = jnp.dtype(in_dtype).itemsize
    out_bytes = jnp.dtype(out_dtype).itemsize
    w_vmem = 2 * _round_up(r * P, 8) * _lane_pad(r * d) * jnp.dtype(w_dtype).itemsize
    per_row = 2 * (_lane_pad(r * P) * in_bytes + _lane_pad(r * d) * out_bytes)
    avail = max(budget - w_vmem - (1 << 20), 8 * per_row)
    tr = max(8, (avail // per_row) // 8 * 8)
    tr = min(tr, _round_up(Mr, 8))
    # Keep >= 2 parallel grid steps when there is enough work (v7x: 2 TCs).
    if Mr >= 16 and pl.cdiv(Mr, tr) < 2:
        tr = _round_up(pl.cdiv(Mr, 2), 8)
    grid = (pl.cdiv(Mr, tr),)

    cost = pl.CostEstimate(
        flops=int(2 * M * P * d),
        transcendentals=0,
        bytes_accessed=int(M * P * in_bytes + M * d * out_bytes
                           + (r * P) * (r * d) * jnp.dtype(w_dtype).itemsize))

    out = pl.pallas_call(
        _patch_kernel,
        out_shape=jax.ShapeDtypeStruct((Mr, r * d), out_dtype),
        grid_spec=pltpu.PrefetchScalarGridSpec(
            num_scalar_prefetch=0,
            grid=grid,
            in_specs=[
                pl.BlockSpec((tr, r * P), lambda i: (i, 0)),     # packed patches
                pl.BlockSpec((r * P, r * d), lambda i: (0, 0)),  # fused weights
                pl.BlockSpec((1, r * d), lambda i: (0, 0)),      # tiled bias
            ],
            out_specs=pl.BlockSpec((tr, r * d), lambda i: (i, 0)),
        ),
        compiler_params=pltpu.CompilerParams(
            dimension_semantics=("parallel",),
            vmem_limit_bytes=vmem_limit),
        cost_estimate=cost,
    )(xp, w_big, b_big)

    out = out.reshape(M_pad, d)
    if M_pad != M:
        out = out[:M]
    out = out.reshape(B, N, n_patch, d)                                      # (B,N,L/P,d)
    if transpose_output:
        # Matches PyTorch semantics; costs one extra HBM read+write of the
        # output. Prefer transpose_output=False when the consumer allows it.
        out = jnp.transpose(out, (0, 1, 3, 2))                               # (B,N,d,L/P)
    return out


if __name__ == "__main__":
    B, N, C, L = 2, 4, 1, 16
    P, D = 8, 32                      # patch_size, output_channel

    key = jax.random.PRNGKey(0)
    kx, kw, kb = jax.random.split(key, 3)
    x = jax.random.normal(kx, (B, N, C, L), dtype=jnp.float32)

    # Deterministic nn.Linear((P/2+1)*2 -> D) init (uniform +/- 1/sqrt(fan_in)).
    in_feat = (P // 2 + 1) * 2
    bound = 1.0 / np.sqrt(in_feat)
    weight = jax.random.uniform(kw, (D, in_feat), minval=-bound, maxval=bound,
                                dtype=jnp.float32)
    bias = jax.random.uniform(kb, (D,), minval=-bound, maxval=bound,
                              dtype=jnp.float32)

    out = jax.block_until_ready(patch_forward(x, weight, bias, P))

    # Pure-JAX reference of the PyTorch forward for a correctness check.
    patches_ref = x.reshape(B, N, C, L // P, P)
    spec = jnp.fft.rfft(patches_ref, axis=-1)
    feat = jnp.concatenate([spec.real, spec.imag], axis=-1)[:, :, 0]   # squeeze C
    ref = jnp.einsum('bnpf,df->bnpd', feat, weight) + bias
    ref = jnp.transpose(ref, (0, 1, 3, 2))                             # (B,N,d,L/P)

    assert out.shape == (B, N, D, L // P)
    np.testing.assert_allclose(np.asarray(out), np.asarray(ref),
                               rtol=1e-4, atol=1e-4)
    print("KERNEL_OK")
</pallas_src>

<mosaic_0001>
module attributes {stable_mosaic.version = 11 : i64} {
  func.func @_patch_kernel(%arg0: i32, %arg1: memref<8x128xf32, #tpu.memory_space<vmem>>, %arg2: memref<128x512xf32, #tpu.memory_space<vmem>>, %arg3: memref<1x512xf32, #tpu.memory_space<vmem>>, %arg4: memref<8x512xf32, #tpu.memory_space<vmem>>) attributes {dimension_semantics = [#tpu.dimension_semantics<parallel>], iteration_bounds = array<i64: 1>, scalar_prefetch = 0 : i64, scratch_operands = 0 : i64, tpu.core_type = #tpu.core_type<tc>, window_params = [{transform_indices = @transform_0, window_bounds = array<i64: 8, 128>}, {pipeline_mode = #tpu.pipeline_mode<synchronous>, transform_indices = @transform_1, window_bounds = array<i64: 128, 512>}, {pipeline_mode = #tpu.pipeline_mode<synchronous>, transform_indices = @transform_2, window_bounds = array<i64: 1, 512>}, {transform_indices = @transform_3, window_bounds = array<i64: 8, 512>}]} {
    %c0 = arith.constant 0 : index
    %c0_0 = arith.constant 0 : index
    %0 = vector.load %arg1[%c0, %c0_0] : memref<8x128xf32, #tpu.memory_space<vmem>>, vector<8x128xf32>
    %c0_1 = arith.constant 0 : index
    %c0_2 = arith.constant 0 : index
    %1 = vector.load %arg2[%c0_1, %c0_2] : memref<128x512xf32, #tpu.memory_space<vmem>>, vector<128x512xf32>
    %cst = arith.constant dense<0.000000e+00> : vector<8x512xf32>
    %2 = tpu.matmul %0, %1, %cst {dimension_numbers = #tpu.dot_dimension_numbers<[1], [0], [0], [1], [0, 0, 1, 1], [], []>} : vector<8x128xf32>, vector<128x512xf32>, vector<8x512xf32> -> vector<8x512xf32>
    %c0_3 = arith.constant 0 : index
    %c0_4 = arith.constant 0 : index
    %3 = vector.load %arg3[%c0_3, %c0_4] : memref<1x512xf32, #tpu.memory_space<vmem>>, vector<1x512xf32>
    %4 = vector.broadcast %3 : vector<1x512xf32> to vector<8x512xf32>
    %5 = arith.addf %2, %4 : vector<8x512xf32>
    %c0_5 = arith.constant 0 : index
    %c0_6 = arith.constant 0 : index
    %6 = vector.load %arg4[%c0_5, %c0_6] : memref<8x512xf32, #tpu.memory_space<vmem>>, vector<8x512xf32>
    tpu.vector_store %arg4[%c0_5, %c0_6], %5 {strides = array<i32>} : memref<8x512xf32, #tpu.memory_space<vmem>>, vector<8x512xf32>,
    return
  }
  func.func @transform_0(%arg0: i32) -> (i32, i32) {
    %c0_i32 = arith.constant 0 : i32
    %c0_i32_0 = arith.constant 0 : i32
    return %arg0, %c0_i32 : i32, i32
  }
  func.func @transform_1(%arg0: i32) -> (i32, i32) {
    %c0_i32 = arith.constant 0 : i32
    %c0_i32_0 = arith.constant 0 : i32
    %c0_i32_1 = arith.constant 0 : i32
    return %c0_i32, %c0_i32_0 : i32, i32
  }
  func.func @transform_2(%arg0: i32) -> (i32, i32) {
    %c0_i32 = arith.constant 0 : i32
    %c0_i32_0 = arith.constant 0 : i32
    %c0_i32_1 = arith.constant 0 : i32
    return %c0_i32, %c0_i32_0 : i32, i32
  }
  func.func @transform_3(%arg0: i32) -> (i32, i32) {
    %c0_i32 = arith.constant 0 : i32
    %c0_i32_0 = arith.constant 0 : i32
    return %arg0, %c0_i32 : i32, i32
  }
}

</mosaic_0001>

<llo_original>
// kernel: tpu_custom_call.1
$region0: #{tpu_custom_call.1}
  #allocation0 [shape = 'u32[]', space=smem, size = 0x4, offset = 0x4, fixed_abs, tag = 'smem constant byte address 0x4 - core index']
  #allocation1 [shape = 'u32[144,128]{1,0:T(1,128)}', space=vmem, size = 0x12000, scoped, tag = 'internal scratch']
  %s0 = inlined_call_operand.hbm [shape: f32[1,128], index: 0, kind: input, shape index: {}]
  %s1 = inlined_call_operand.hbm [shape: f32[128,512], index: 1, kind: input, shape index: {}]
  %s2 = inlined_call_operand.hbm [shape: f32[1,512], index: 2, kind: input, shape index: {}]
  %s3 = inlined_call_operand.hbm [shape: f32[1,512], index: 3, kind: output, shape index: {}]
  %s4 = sld [smem:[#allocation0]]
  $region34: #{tpu_custom_call.1} parent=0
    _
  %s6 = ssub.s32 1, %s4
  %s7 = scalar_select 0, %s6, %s4
  $region1: #{tpu_custom_call.1} parent=0
    #allocation2 [shape = 'u8[4096]{0}', space=vmem, size = 0x1000, scoped, tag = 'input window, operand 0, single buffered']
    #allocation3 [shape = 's32[1]{0}', space=sflag, size = 0x4, scoped, tag = 'scoped memory for tpu_custom_call.1']
    #allocation4 [shape = 's32[1]{0}', space=sflag, size = 0x4, scoped, tag = 'scoped memory for tpu_custom_call.1']
    #allocation5 [shape = 'u8[262144]{0}', space=vmem, size = 0x40000, scoped, tag = 'input window, operand 1, single buffered']
    #allocation6 [shape = 's32[1]{0}', space=sflag, size = 0x4, scoped, tag = 'scoped memory for tpu_custom_call.1']
    #allocation7 [shape = 'u8[2048]{0}', space=vmem, size = 0x800, scoped, tag = 'input window, operand 2, single buffered']
    #allocation8 [shape = 'u8[16384]{0}', space=vmem, size = 0x4000, scoped, tag = 'output window, operand 0, single buffered']
    %8 = vsyncpa [#allocation3], 0
    %9 = vsyncpa [#allocation6], 0
    %10 = vsyncpa [#allocation4], 0
    // Predicated region
    $region2: #{tpu_custom_call.1} parent=1 // pred_check
      _
    $region3: #{tpu_custom_call.1} parent=1 // pred_check_branch
      %12 = sbr.rel (0) target = $region5
    $region4: #{tpu_custom_call.1} parent=1 // pred_region
      %s14 = ssub.s32 128, 16
      %15 = vsyncadd [#allocation3], %s14
      %s16 = sshll.u32 [#allocation2], 4
      %s17 = int_to_ptr.vmem [resolvable:$true] %s16
      %22 = dma.hbm_to_vmem [thread:$0]  %s0, 16, %s17, [#allocation3], 16, 16, 1
    $region5: #{tpu_custom_call.1} parent=1 // pred_fallthru
      _
    // Predicated region
    $region6: #{tpu_custom_call.1} parent=1 // pred_check
      _
    $region7: #{tpu_custom_call.1} parent=1 // pred_check_branch
      %24 = sbr.rel (0) target = $region9
    $region8: #{tpu_custom_call.1} parent=1 // pred_region
      %s26 = ssub.s32 8192, 8192
      %27 = vsyncadd [#allocation6], %s26
      %s28 = sshll.u32 [#allocation5], 4
      %s29 = int_to_ptr.vmem [resolvable:$true] %s28
      %34 = dma.hbm_to_vmem [thread:$0]  %s1, 8192, %s29, [#allocation6], 512, 512, 32
    $region9: #{tpu_custom_call.1} parent=1 // pred_fallthru
      _
    // Predicated region
    $region10: #{tpu_custom_call.1} parent=1 // pred_check
      _
    $region11: #{tpu_custom_call.1} parent=1 // pred_check_branch
      %36 = sbr.rel (0) target = $region13
    $region12: #{tpu_custom_call.1} parent=1 // pred_region
      %s38 = ssub.s32 64, 64
      %39 = vsyncadd [#allocation6], %s38
      %s41 = sshll.u32 [#allocation7], 4
      %s42 = int_to_ptr.vmem [resolvable:$true] %s41
      %44 = dma.hbm_to_vmem [thread:$0]  %s2, 64, %s42, [#allocation6]
    $region13: #{tpu_custom_call.1} parent=1 // pred_fallthru
      _
    // Predicated region
    $region14: #{tpu_custom_call.1} parent=1 // pred_check
      _
    $region15: #{tpu_custom_call.1} parent=1 // pred_check_branch
      %46 = sbr.rel (0) target = $region17
    $region16: #{tpu_custom_call.1} parent=1 // pred_region
      %47 = dma.done [#allocation3], 128
    $region17: #{tpu_custom_call.1} parent=1 // pred_fallthru
      _
    // Predicated region
    $region18: #{tpu_custom_call.1} parent=1 // pred_check
      _
    $region19: #{tpu_custom_call.1} parent=1 // pred_check_branch
      %49 = sbr.rel (0) target = $region21
    $region20: #{tpu_custom_call.1} parent=1 // pred_region
      %50 = dma.done [#allocation6], 8192
    $region21: #{tpu_custom_call.1} parent=1 // pred_fallthru
      _
    // Predicated region
    $region22: #{tpu_custom_call.1} parent=1 // pred_check
      _
    $region23: #{tpu_custom_call.1} parent=1 // pred_check_branch
      %52 = sbr.rel (0) target = $region25
    $region24: #{tpu_custom_call.1} parent=1 // pred_region
      %53 = dma.done [#allocation6], 64
    $region25: #{tpu_custom_call.1} parent=1 // pred_fallthru
      _
    %v54 = vld [vmem:[#allocation2] sm:$0xff]
    %v55 = vld [vmem:[#allocation5] sm:$0xff]
    %v56 = vld [vmem:[#allocation5 + $0x8] sm:$0xff]
    %v57 = vld [vmem:[#allocation5 + $0x10] sm:$0xff]
    %v58 = vld [vmem:[#allocation5 + $0x18] sm:$0xff]
    %v59 = vld [vmem:[#allocation5 + $0x20] sm:$0xff]
    %v60 = vld [vmem:[#allocation5 + $0x28] sm:$0xff]
    %v61 = vld [vmem:[#allocation5 + $0x30] sm:$0xff]
    %v62 = vld [vmem:[#allocation5 + $0x38] sm:$0xff]
    %v63 = vld [vmem:[#allocation5 + $0x40] sm:$0xff]
    %v64 = vld [vmem:[#allocation5 + $0x48] sm:$0xff]
    %v65 = vld [vmem:[#allocation5 + $0x50] sm:$0xff]
    %v66 = vld [vmem:[#allocation5 + $0x58] sm:$0xff]
    %v67 = vld [vmem:[#allocation5 + $0x60] sm:$0xff]
    %v68 = vld [vmem:[#allocation5 + $0x68] sm:$0xff]
    %v69 = vld [vmem:[#allocation5 + $0x70] sm:$0xff]
    %v70 = vld [vmem:[#allocation5 + $0x78] sm:$0xff]
    %v71 = vld [vmem:[#allocation5 + $0x80] sm:$0xff]
    %v72 = vld [vmem:[#allocation5 + $0x88] sm:$0xff]
    %v73 = vld [vmem:[#allocation5 + $0x90] sm:$0xff]
    %v74 = vld [vmem:[#allocation5 + $0x98] sm:$0xff]
    %v75 = vld [vmem:[#allocation5 + $0xa0] sm:$0xff]
    %v76 = vld [vmem:[#allocation5 + $0xa8] sm:$0xff]
    %v77 = vld [vmem:[#allocation5 + $0xb0] sm:$0xff]
    %v78 = vld [vmem:[#allocation5 + $0xb8] sm:$0xff]
    %v79 = vld [vmem:[#allocation5 + $0xc0] sm:$0xff]
    %v80 = vld [vmem:[#allocation5 + $0xc8] sm:$0xff]
    %v81 = vld [vmem:[#allocation5 + $0xd0] sm:$0xff]
    %v82 = vld [vmem:[#allocation5 + $0xd8] sm:$0xff]
    %v83 = vld [vmem:[#allocation5 + $0xe0] sm:$0xff]
    %v84 = vld [vmem:[#allocation5 + $0xe8] sm:$0xff]
    %v85 = vld [vmem:[#allocation5 + $0xf0] sm:$0xff]
    %v86 = vld [vmem:[#allocation5 + $0xf8] sm:$0xff]
    %v87 = vld [vmem:[#allocation5 + $0x100] sm:$0xff]
    %v88 = vld [vmem:[#allocation5 + $0x108] sm:$0xff]
    %v89 = vld [vmem:[#allocation5 + $0x110] sm:$0xff]
    %v90 = vld [vmem:[#allocation5 + $0x118] sm:$0xff]
    %v91 = vld [vmem:[#allocation5 + $0x120] sm:$0xff]
    %v92 = vld [vmem:[#allocation5 + $0x128] sm:$0xff]
    %v93 = vld [vmem:[#allocation5 + $0x130] sm:$0xff]
    %v94 = vld [vmem:[#allocation5 + $0x138] sm:$0xff]
    %v95 = vld [vmem:[#allocation5 + $0x140] sm:$0xff]
    %v96 = vld [vmem:[#allocation5 + $0x148] sm:$0xff]
    %v97 = vld [vmem:[#allocation5 + $0x150] sm:$0xff]
    %v98 = vld [vmem:[#allocation5 + $0x158] sm:$0xff]
    %v99 = vld [vmem:[#allocation5 + $0x160] sm:$0xff]
    %v100 = vld [vmem:[#allocation5 + $0x168] sm:$0xff]
    %v101 = vld [vmem:[#allocation5 + $0x170] sm:$0xff]
    %v102 = vld [vmem:[#allocation5 + $0x178] sm:$0xff]
    %v103 = vld [vmem:[#allocation5 + $0x180] sm:$0xff]
    %v104 = vld [vmem:[#allocation5 + $0x188] sm:$0xff]
    %v105 = vld [vmem:[#allocation5 + $0x190] sm:$0xff]
    %v106 = vld [vmem:[#allocation5 + $0x198] sm:$0xff]
    %v107 = vld [vmem:[#allocation5 + $0x1a0] sm:$0xff]
    %v108 = vld [vmem:[#allocation5 + $0x1a8] sm:$0xff]
    %v109 = vld [vmem:[#allocation5 + $0x1b0] sm:$0xff]
    %v110 = vld [vmem:[#allocation5 + $0x1b8] sm:$0xff]
    %v111 = vld [vmem:[#allocation5 + $0x1c0] sm:$0xff]
    %v112 = vld [vmem:[#allocation5 + $0x1c8] sm:$0xff]
    %v113 = vld [vmem:[#allocation5 + $0x1d0] sm:$0xff]
    %v114 = vld [vmem:[#allocation5 + $0x1d8] sm:$0xff]
    %v115 = vld [vmem:[#allocation5 + $0x1e0] sm:$0xff]
    %v116 = vld [vmem:[#allocation5 + $0x1e8] sm:$0xff]
    %v117 = vld [vmem:[#allocation5 + $0x1f0] sm:$0xff]
    %v118 = vld [vmem:[#allocation5 + $0x1f8] sm:$0xff]
    %v119 = vld [vmem:[#allocation7] sm:$0xf]
    %v121 = vlaneseq
    %v122 = vshrl.u32 %v121, 7
    %v123 = vsub.s32 0, %v122
    %v124 = vrot.slane %v119, %v123
    %v125 = vlaneseq
    %v126 = vshrl.u32 %v125, 7
    %v127 = vsub.s32 1, %v126
    %v128 = vrot.slane %v119, %v127
    %v129 = vlaneseq
    %v130 = vshrl.u32 %v129, 7
    %v131 = vsub.s32 2, %v130
    %v132 = vrot.slane %v119, %v131
    %v133 = vlaneseq
    %v134 = vshrl.u32 %v133, 7
    %v135 = vsub.s32 3, %v134
    %v136 = vrot.slane %v119, %v135
    %141 = vmatprep.subr.mxu0 %v116
    %142 = vmatpush1.msra.mxu0 %v115
    %143 = vmatprep.subr.mxu0 %v112
    %144 = vmatpush1.msra.mxu0 %v111
    %145 = vmatprep.subr.mxu0 %v108
    %146 = vmatpush1.msra.mxu0 %v107
    %147 = vmatprep.subr.mxu0 %v104
    %148 = vmatpush1.msra.mxu0 %v103
    %149 = vmatprep.subr.mxu0 %v100
    %150 = vmatpush1.msra.mxu0 %v99
    %151 = vmatprep.subr.mxu0 %v96
    %152 = vmatpush1.msra.mxu0 %v95
    %153 = vmatprep.subr.mxu0 %v92
    %154 = vmatpush1.msra.mxu0 %v91
    %155 = vmatprep.subr.mxu0 %v88
    %156 = vmatpush1.msra.mxu0 %v87
    %157 = vmatprep.subr.mxu0 %v84
    %158 = vmatpush1.msra.mxu0 %v83
    %159 = vmatprep.subr.mxu0 %v80
    %160 = vmatpush1.msra.mxu0 %v79
    %161 = vmatprep.subr.mxu0 %v76
    %162 = vmatpush1.msra.mxu0 %v75
    %163 = vmatprep.subr.mxu0 %v72
    %164 = vmatpush1.msra.mxu0 %v71
    %165 = vmatprep.subr.mxu0 %v68
    %166 = vmatpush1.msra.mxu0 %v67
    %167 = vmatprep.subr.mxu0 %v64
    %168 = vmatpush1.msra.mxu0 %v63
    %169 = vmatprep.subr.mxu0 %v60
    %170 = vmatpush1.msra.mxu0 %v59
    %171 = vmatprep.subr.mxu0 %v56
    %172 = vmatpush1.msra.mxu0 %v55
    %173 = vmatprep.subr.mxu0 0.0
    %174 = vmatpush2.msra.mxu0 0.0
    %175 = vmatprep.subr.mxu0 0.0
    %176 = vmatpush2.msra.mxu0 0.0
    %177 = vmatprep.subr.mxu0 0.0
    %178 = vmatpush2.msra.mxu0 0.0
    %179 = vmatprep.subr.mxu0 0.0
    %180 = vmatpush2.msra.mxu0 0.0
    %181 = vmatprep.subr.mxu0 0.0
    %182 = vmatpush2.msra.mxu0 0.0
    %183 = vmatprep.subr.mxu0 0.0
    %184 = vmatpush2.msra.mxu0 0.0
    %185 = vmatprep.subr.mxu0 0.0
    %186 = vmatpush2.msra.mxu0 0.0
    %187 = vmatprep.subr.mxu0 0.0
    %188 = vmatpush2.msra.mxu0 0.0
    %189 = vmatprep.subr.mxu0 0.0
    %190 = vmatpush2.msra.mxu0 0.0
    %191 = vmatprep.subr.mxu0 0.0
    %192 = vmatpush2.msra.mxu0 0.0
    %193 = vmatprep.subr.mxu0 0.0
    %194 = vmatpush2.msra.mxu0 0.0
    %195 = vmatprep.subr.mxu0 0.0
    %196 = vmatpush2.msra.mxu0 0.0
    %197 = vmatprep.subr.mxu0 0.0
    %198 = vmatpush2.msra.mxu0 0.0
    %199 = vmatprep.subr.mxu0 0.0
    %200 = vmatpush2.msra.mxu0 0.0
    %201 = vmatprep.subr.mxu0 0.0
    %202 = vmatpush2.msra.mxu0 0.0
    %203 = vmatprep.subr.mxu0 0.0
    %204 = vmatpush2.msra.mxu0 0.0
    %205 = vmatprep.mubr.f32.mxu0 0.0
    %206 = vmatmul.mubr.f32.gmra.mxu0 %v54
    %v207 = vpop.f32.mrf.mxu0
    %v208 = vadd.f32 %v124, %v207
    %v209 = vpop.f32.mrf.mxu0
    %v210 = vadd.f32 %v128, %v209
    %211 = vdwg.mxu0
    %212 = vmatprep.subr.mxu0 %v118
    %213 = vmatpush1.msra.mxu0 %v117
    %214 = vmatprep.subr.mxu0 %v114
    %215 = vmatpush1.msra.mxu0 %v113
    %216 = vmatprep.subr.mxu0 %v110
    %217 = vmatpush1.msra.mxu0 %v109
    %218 = vmatprep.subr.mxu0 %v106
    %219 = vmatpush1.msra.mxu0 %v105
    %220 = vmatprep.subr.mxu0 %v102
    %221 = vmatpush1.msra.mxu0 %v101
    %222 = vmatprep.subr.mxu0 %v98
    %223 = vmatpush1.msra.mxu0 %v97
    %224 = vmatprep.subr.mxu0 %v94
    %225 = vmatpush1.msra.mxu0 %v93
    %226 = vmatprep.subr.mxu0 %v90
    %227 = vmatpush1.msra.mxu0 %v89
    %228 = vmatprep.subr.mxu0 %v86
    %229 = vmatpush1.msra.mxu0 %v85
    %230 = vmatprep.subr.mxu0 %v82
    %231 = vmatpush1.msra.mxu0 %v81
    %232 = vmatprep.subr.mxu0 %v78
    %233 = vmatpush1.msra.mxu0 %v77
    %234 = vmatprep.subr.mxu0 %v74
    %235 = vmatpush1.msra.mxu0 %v73
    %236 = vmatprep.subr.mxu0 %v70
    %237 = vmatpush1.msra.mxu0 %v69
    %238 = vmatprep.subr.mxu0 %v66
    %239 = vmatpush1.msra.mxu0 %v65
    %240 = vmatprep.subr.mxu0 %v62
    %241 = vmatpush1.msra.mxu0 %v61
    %242 = vmatprep.subr.mxu0 %v58
    %243 = vmatpush1.msra.mxu0 %v57
    %244 = vmatprep.subr.mxu0 0.0
    %245 = vmatpush2.msra.mxu0 0.0
    %246 = vmatprep.subr.mxu0 0.0
    %247 = vmatpush2.msra.mxu0 0.0
    %248 = vmatprep.subr.mxu0 0.0
    %249 = vmatpush2.msra.mxu0 0.0
    %250 = vmatprep.subr.mxu0 0.0
    %251 = vmatpush2.msra.mxu0 0.0
    %252 = vmatprep.subr.mxu0 0.0
    %253 = vmatpush2.msra.mxu0 0.0
    %254 = vmatprep.subr.mxu0 0.0
    %255 = vmatpush2.msra.mxu0 0.0
    %256 = vmatprep.subr.mxu0 0.0
    %257 = vmatpush2.msra.mxu0 0.0
    %258 = vmatprep.subr.mxu0 0.0
    %259 = vmatpush2.msra.mxu0 0.0
    %260 = vmatprep.subr.mxu0 0.0
    %261 = vmatpush2.msra.mxu0 0.0
    %262 = vmatprep.subr.mxu0 0.0
    %263 = vmatpush2.msra.mxu0 0.0
    %264 = vmatprep.subr.mxu0 0.0
    %265 = vmatpush2.msra.mxu0 0.0
    %266 = vmatprep.subr.mxu0 0.0
    %267 = vmatpush2.msra.mxu0 0.0
    %268 = vmatprep.subr.mxu0 0.0
    %269 = vmatpush2.msra.mxu0 0.0
    %270 = vmatprep.subr.mxu0 0.0
    %271 = vmatpush2.msra.mxu0 0.0
    %272 = vmatprep.subr.mxu0 0.0
    %273 = vmatpush2.msra.mxu0 0.0
    %274 = vmatprep.subr.mxu0 0.0
    %275 = vmatpush2.msra.mxu0 0.0
    %276 = vmatprep.mubr.f32.mxu0 0.0
    %277 = vmatmul.mubr.f32.gmra.mxu0 %v54
    %v278 = vpop.f32.mrf.mxu0
    %v279 = vadd.f32 %v132, %v278
    %v280 = vpop.f32.mrf.mxu0
    %v281 = vadd.f32 %v136, %v280
    %282 = vdwg.mxu0
    %v287 = vcombine.low %v208, %v210
    %v288 = vcombine.high %v208, %v210
    %v289 = vcombine.low %v279, %v281
    %v290 = vcombine.high %v279, %v281
    %v292 = vunpack.c.l.s4 1966171168
    %v293 = vunpack.c.0.s8 %v292
    %v294 = vlaneseq
    %v295 = vshrl.u32 %v294, 7
    %v296 = vsub.s32 %v293, %v295
    %v297 = vrot.slane %v287, %v296
    %v299 = vunpack.c.l.s4 1966171168
    %v300 = vunpack.c.0.s8 %v299
    %v301 = vlaneseq
    %v302 = vshrl.u32 %v301, 7
    %v303 = vsub.s32 %v300, %v302
    %v304 = vrot.slane %v288, %v303
    %v306 = vunpack.c.l.s4 1966171168
    %v307 = vunpack.c.0.s8 %v306
    %v308 = vlaneseq
    %v309 = vshrl.u32 %v308, 7
    %v310 = vsub.s32 %v307, %v309
    %v311 = vrot.slane %v289, %v310
    %v313 = vunpack.c.l.s4 1966171168
    %v314 = vunpack.c.0.s8 %v313
    %v315 = vlaneseq
    %v316 = vshrl.u32 %v315, 7
    %v317 = vsub.s32 %v314, %v316
    %v318 = vrot.slane %v290, %v317
    %v319 = vcombine.low %v297, %v311
    %v320 = vcombine.high %v297, %v311
    %v321 = vcombine.low %v304, %v318
    %v322 = vcombine.high %v304, %v318
    %v324 = vunpack.c.l.s4 1966171168
    %v325 = vunpack.c.0.s8 %v324
    %v326 = vlaneseq
    %v327 = vshrl.u32 %v326, 7
    %v328 = vsub.s32 %v325, %v327
    %v329 = vrot.slane %v319, %v328
    %v331 = vunpack.c.l.s4 1966171168
    %v332 = vunpack.c.0.s8 %v331
    %v333 = vlaneseq
    %v334 = vshrl.u32 %v333, 7
    %v335 = vsub.s32 %v332, %v334
    %v336 = vrot.slane %v321, %v335
    %v338 = vunpack.c.l.s4 1966171168
    %v339 = vunpack.c.0.s8 %v338
    %v340 = vlaneseq
    %v341 = vshrl.u32 %v340, 7
    %v342 = vsub.s32 %v339, %v341
    %v343 = vrot.slane %v320, %v342
    %v345 = vunpack.c.l.s4 1966171168
    %v346 = vunpack.c.0.s8 %v345
    %v347 = vlaneseq
    %v348 = vshrl.u32 %v347, 7
    %v349 = vsub.s32 %v346, %v348
    %v350 = vrot.slane %v322, %v349
    %v351 = vcombine.high %v329, %v329
    %v352 = vcombine.high %v336, %v336
    %v353 = vcombine.high %v343, %v343
    %v354 = vcombine.high %v350, %v350
    %v363 = vlaneseq
    %vm364 = vcmp.ge.s32.totalorder %v363, 0
    %vm365 = vcmp.lt.s32.totalorder %v363, 512
    %vm366 = vmand %vm364, %vm365
    %367 = vst.msk [vmem:[#allocation8] sm:$0xf] %vm366, %v329
    %368 = vst.msk [vmem:[#allocation8 + $0x4] sm:$0xf] %vm366, %v343
    %369 = vst.msk [vmem:[#allocation8 + $0x8] sm:$0xf] %vm366, %v351
    %370 = vst.msk [vmem:[#allocation8 + $0xc] sm:$0xf] %vm366, %v353
    %371 = vst.msk [vmem:[#allocation8 + $0x10] sm:$0xf] %vm366, %v336
    %372 = vst.msk [vmem:[#allocation8 + $0x14] sm:$0xf] %vm366, %v350
    %373 = vst.msk [vmem:[#allocation8 + $0x18] sm:$0xf] %vm366, %v352
    %374 = vst.msk [vmem:[#allocation8 + $0x1c] sm:$0xf] %vm366, %v354
    // Predicated region
    $region26: #{tpu_custom_call.1} parent=1 // pred_check
      _
    $region27: #{tpu_custom_call.1} parent=1 // pred_check_branch
      %376 = sbr.rel (0) target = $region29
    $region28: #{tpu_custom_call.1} parent=1 // pred_region
      %s378 = ssub.s32 512, 64
      %379 = vsyncadd [#allocation4], %s378
      %s380 = sshll.u32 [#allocation8], 4
      %s381 = int_to_ptr.vmem [resolvable:$true] %s380
      %386 = dma.vmem_to_hbm [thread:$0]  %s381, 64, %s3, [#allocation4], 64, 64, 4
    $region29: #{tpu_custom_call.1} parent=1 // pred_fallthru
      _
    // Predicated region
    $region30: #{tpu_custom_call.1} parent=1 // pred_check
      _
    $region31: #{tpu_custom_call.1} parent=1 // pred_check_branch
      %388 = sbr.rel (0) target = $region33
    $region32: #{tpu_custom_call.1} parent=1 // pred_region
      %389 = dma.done [#allocation4], 512
    $region33: #{tpu_custom_call.1} parent=1 // pred_fallthru
      _
    %390 = vsyncpa [#allocation3], 1
    %391 = vsyncpa [#allocation6], 1
    %392 = vsyncpa [#allocation4], 1

</llo_original>
